<compile_context>
chip_gen: v7x
topology: tpu7x:2x2x1
jax: 0.10.0
libtpu: 0.0.40
codegen_flags: <defaults>
</compile_context>

<pallas_src>
import math
import jax
import jax.numpy as jnp
from jax.experimental import pallas as pl
from jax.experimental.pallas import tpu as pltpu


def pos2weight_kernel(x_ref, w1_ref, w2_ref, b2_ref, o_ref):
    # x_ref : (TN, 7)    f32  (last column = 1.0 -> bias of layer 1 folded in)
    # w1_ref: (7, 256)   f32  (last row = b1)
    # w2_ref: (256, TD)  bf16
    # b2_ref: (1, TD)    f32
    # o_ref : (TN, TD)   out dtype (bf16 by default)
    h = jnp.dot(x_ref[...], w1_ref[...], preferred_element_type=jnp.float32)
    h = jnp.maximum(h, 0.0)                                   # ReLU in f32
    out = jnp.dot(h.astype(jnp.bfloat16), w2_ref[...],
                  preferred_element_type=jnp.float32)
    o_ref[...] = (out + b2_ref[...]).astype(o_ref.dtype)


def _round_up(x, m):
    return ((x + m - 1) // m) * m


# Conservative per-kernel VMEM budget: fits v7x's 64 MiB physical VMEM with
# headroom, and is well inside v5e/v6e's 128 MiB.
_VMEM_BUDGET_BYTES = 40 * 1024 * 1024


def _vmem_bytes(tn, td, din_aug, dhid, out_itemsize):
    return (2 * tn * din_aug * 4          # x tile (f32), double-buffered
            + 2 * din_aug * dhid * 4      # w1 (f32), double-buffered
            + 2 * dhid * td * 2           # w2 tile (bf16), double-buffered
            + 2 * td * 4                  # b2 tile (f32), double-buffered
            + 2 * tn * td * out_itemsize  # output tile, double-buffered
            + tn * dhid * 4               # h intermediate (f32)
            + tn * dhid * 2)              # h cast to bf16 for 2nd matmul


def pos2weight_forward(x, w1, b1, w2, b2, *, tile_n=8192, tile_dout=1024,
                       out_dtype=jnp.bfloat16):
    """x: (N, 6) f32. Weights stored (in, out). Returns (N, K*K*inC*outC)."""
    N, din = x.shape
    dhid = w1.shape[1]
    dout = w2.shape[1]
    din_aug = din + 1                      # ones column folds b1 into w1
    out_itemsize = jnp.dtype(out_dtype).itemsize

    # --- DOUT tiling: pad to a multiple of 128 for lane-dense output stores.
    #     When the padded DOUT fits one tile (common case), the j axis
    #     collapses and w2/b2 are DMA'd exactly once. ------------------------
    dout_pad = _round_up(dout, 128)
    tile_d = min(_round_up(tile_dout, 128), dout_pad)
    while dout_pad % tile_d != 0:
        tile_d -= 128
    tile_d = max(tile_d, 128)

    # --- Row tiling: multiples of 16 (bf16 output sublane packing), clamped
    #     by N, then shrunk until the working set fits the VMEM budget. ------
    n16 = _round_up(max(N, 1), 16)
    tile_n_eff = max(16, _round_up(min(tile_n, n16), 16))
    while (_vmem_bytes(tile_n_eff, tile_d, din_aug, dhid, out_itemsize)
           > _VMEM_BUDGET_BYTES and tile_n_eff > 256):
        tile_n_eff = max(256, _round_up(tile_n_eff // 2, 16))

    n_pad = _round_up(max(N, 1), tile_n_eff)

    # v7x megacore: ensure the (parallel) row axis has >= 2 steps when possible
    # so both TensorCores get work.
    if n_pad // tile_n_eff < 2 and n_pad >= 32:
        tile_n_eff = _round_up(n_pad // 2, 16)
        n_pad = _round_up(N, tile_n_eff)

    grid = (dout_pad // tile_d, n_pad // tile_n_eff)   # (DOUT slow, rows fast)

    # --- One-time parameter / input prep (casts & padding outside the grid) --
    x_aug = jnp.concatenate(
        [x.astype(jnp.float32), jnp.ones((N, 1), jnp.float32)], axis=1)
    x_p = jnp.zeros((n_pad, din_aug), jnp.float32).at[:N, :].set(x_aug)
    w1_aug = jnp.concatenate(
        [w1.astype(jnp.float32), b1.reshape(1, dhid).astype(jnp.float32)],
        axis=0)
    w2_b = jnp.zeros((dhid, dout_pad), jnp.bfloat16).at[:, :dout].set(
        w2.astype(jnp.bfloat16))
    b2_2d = jnp.zeros((1, dout_pad), jnp.float32).at[:, :dout].set(
        b2.reshape(1, dout).astype(jnp.float32))

    flops = 2 * n_pad * (din_aug * dhid + dhid * dout_pad)
    bytes_accessed = (x_p.size * 4 + w1_aug.size * 4 + w2_b.size * 2
                      + b2_2d.size * 4 + n_pad * dout_pad * out_itemsize)

    est = _vmem_bytes(tile_n_eff, tile_d, din_aug, dhid, out_itemsize)
    vmem_limit = int(min(48 * 1024 * 1024,
                         max(32 * 1024 * 1024, est + (4 << 20))))

    out_padded = pl.pallas_call(
        pos2weight_kernel,
        out_shape=jax.ShapeDtypeStruct((n_pad, dout_pad), out_dtype),
        grid_spec=pltpu.PrefetchScalarGridSpec(
            num_scalar_prefetch=0,
            grid=grid,
            in_specs=[
                # x: tiled over rows (fast axis i), full (tiny) feature dim.
                pl.BlockSpec((tile_n_eff, din_aug), lambda j, i: (i, 0)),
                # first-layer weights (with folded bias): resident every step.
                pl.BlockSpec((din_aug, dhid), lambda j, i: (0, 0)),
                # second-layer params: indexed only by the slow DOUT axis, so
                # they are not re-streamed per row tile.
                pl.BlockSpec((dhid, tile_d), lambda j, i: (0, j)),
                pl.BlockSpec((1, tile_d), lambda j, i: (0, j)),
            ],
            out_specs=pl.BlockSpec((tile_n_eff, tile_d), lambda j, i: (i, j)),
        ),
        compiler_params=pltpu.CompilerParams(
            dimension_semantics=("parallel", "parallel"),
            vmem_limit_bytes=vmem_limit,
        ),
        cost_estimate=pl.CostEstimate(
            flops=flops, transcendentals=0, bytes_accessed=bytes_accessed),
    )(x_p, w1_aug, w2_b, b2_2d)

    # Slice off row padding and the zero DOUT pad columns.
    return out_padded[:N, :dout]


def init_params(key, inC=4, kernel_size=3, outC=3):
    """Deterministic init mimicking torch.nn.Linear defaults (uniform +-1/sqrt(fan_in))."""
    din, dhid = 6, 256
    dout = kernel_size * kernel_size * inC * outC
    k1, k2, k3, k4 = jax.random.split(key, 4)
    bound1 = 1.0 / math.sqrt(din)
    bound2 = 1.0 / math.sqrt(dhid)
    w1 = jax.random.uniform(k1, (din, dhid), jnp.float32, -bound1, bound1)
    b1 = jax.random.uniform(k2, (dhid,), jnp.float32, -bound1, bound1)
    w2 = jax.random.uniform(k3, (dhid, dout), jnp.float32, -bound2, bound2)
    b2 = jax.random.uniform(k4, (dout,), jnp.float32, -bound2, bound2)
    return w1, b1, w2, b2


if __name__ == "__main__":
    key = jax.random.PRNGKey(0)
    kp, kx = jax.random.split(key)

    inC, kernel_size, outC = 4, 3, 3            # module defaults -> DOUT = 108
    w1, b1, w2, b2 = init_params(kp, inC, kernel_size, outC)

    N = 64                                       # number of positional samples
    x = jax.random.normal(kx, (N, 6), jnp.float32)

    out = pos2weight_forward(x, w1, b1, w2, b2)
    out = jax.block_until_ready(out)
    assert out.shape == (N, kernel_size * kernel_size * inC * outC)
    out_f32 = out.astype(jnp.float32)

    # Reference matched to the kernel's math: f32 first layer, bf16 operands
    # for the second matmul with f32 accumulation, bf16 store.
    h_ref = jnp.maximum(x @ w1 + b1, 0.0)
    ref_kernel = (jnp.dot(h_ref.astype(jnp.bfloat16), w2.astype(jnp.bfloat16),
                          preferred_element_type=jnp.float32)
                  + b2).astype(jnp.bfloat16).astype(jnp.float32)
    assert jnp.allclose(out_f32, ref_kernel, atol=3e-3, rtol=3e-2)

    # Loose sanity check against the full-f32 reference (bf16 rounding of the
    # second-layer operands and the bf16 output store only).
    ref_f32 = jnp.maximum(x @ w1 + b1, 0.0) @ w2 + b2
    assert jnp.allclose(out_f32, ref_f32, atol=2e-2, rtol=5e-2)

    print("KERNEL_OK")
</pallas_src>

<mosaic_0001>
module attributes {stable_mosaic.version = 11 : i64} {
  func.func @pos2weight_kernel(%arg0: i32, %arg1: i32, %arg2: memref<32x7xf32, #tpu.memory_space<vmem>>, %arg3: memref<7x256xf32, #tpu.memory_space<vmem>>, %arg4: memref<256x128xbf16, #tpu.memory_space<vmem>>, %arg5: memref<1x128xf32, #tpu.memory_space<vmem>>, %arg6: memref<32x128xbf16, #tpu.memory_space<vmem>>) attributes {dimension_semantics = [#tpu.dimension_semantics<parallel>, #tpu.dimension_semantics<parallel>], iteration_bounds = array<i64: 1, 2>, scalar_prefetch = 0 : i64, scratch_operands = 0 : i64, tpu.core_type = #tpu.core_type<tc>, window_params = [{transform_indices = @transform_0, window_bounds = array<i64: 32, 7>}, {pipeline_mode = #tpu.pipeline_mode<synchronous>, transform_indices = @transform_1, window_bounds = array<i64: 7, 256>}, {transform_indices = @transform_2, window_bounds = array<i64: 256, 128>}, {transform_indices = @transform_3, window_bounds = array<i64: 1, 128>}, {transform_indices = @transform_4, window_bounds = array<i64: 32, 128>}]} {
    %c0 = arith.constant 0 : index
    %c0_0 = arith.constant 0 : index
    %0 = vector.load %arg2[%c0, %c0_0] : memref<32x7xf32, #tpu.memory_space<vmem>>, vector<32x7xf32>
    %c0_1 = arith.constant 0 : index
    %c0_2 = arith.constant 0 : index
    %1 = vector.load %arg3[%c0_1, %c0_2] : memref<7x256xf32, #tpu.memory_space<vmem>>, vector<7x256xf32>
    %cst = arith.constant dense<0.000000e+00> : vector<32x256xf32>
    %2 = tpu.matmul %0, %1, %cst {dimension_numbers = #tpu.dot_dimension_numbers<[1], [0], [0], [1], [0, 0, 1, 1], [], []>} : vector<32x7xf32>, vector<7x256xf32>, vector<32x256xf32> -> vector<32x256xf32>
    %cst_3 = arith.constant 0.000000e+00 : f32
    %3 = vector.broadcast %cst_3 : f32 to vector<32x256xf32>
    %4 = arith.maximumf %2, %3 : vector<32x256xf32>
    %5 = arith.truncf %4 : vector<32x256xf32> to vector<32x256xbf16>
    %c0_4 = arith.constant 0 : index
    %c0_5 = arith.constant 0 : index
    %6 = vector.load %arg4[%c0_4, %c0_5] : memref<256x128xbf16, #tpu.memory_space<vmem>>, vector<256x128xbf16>
    %cst_6 = arith.constant dense<0.000000e+00> : vector<32x128xf32>
    %7 = tpu.matmul %5, %6, %cst_6 {dimension_numbers = #tpu.dot_dimension_numbers<[1], [0], [0], [1], [0, 0, 1, 1], [], []>} : vector<32x256xbf16>, vector<256x128xbf16>, vector<32x128xf32> -> vector<32x128xf32>
    %c0_7 = arith.constant 0 : index
    %c0_8 = arith.constant 0 : index
    %8 = vector.load %arg5[%c0_7, %c0_8] : memref<1x128xf32, #tpu.memory_space<vmem>>, vector<1x128xf32>
    %9 = vector.broadcast %8 : vector<1x128xf32> to vector<32x128xf32>
    %10 = arith.addf %7, %9 : vector<32x128xf32>
    %11 = arith.truncf %10 : vector<32x128xf32> to vector<32x128xbf16>
    %c0_9 = arith.constant 0 : index
    %c0_10 = arith.constant 0 : index
    %12 = vector.load %arg6[%c0_9, %c0_10] : memref<32x128xbf16, #tpu.memory_space<vmem>>, vector<32x128xbf16>
    tpu.vector_store %arg6[%c0_9, %c0_10], %11 {strides = array<i32>} : memref<32x128xbf16, #tpu.memory_space<vmem>>, vector<32x128xbf16>,
    return
  }
  func.func @transform_0(%arg0: i32, %arg1: i32) -> (i32, i32) {
    %c0_i32 = arith.constant 0 : i32
    %c0_i32_0 = arith.constant 0 : i32
    return %arg1, %c0_i32 : i32, i32
  }
  func.func @transform_1(%arg0: i32, %arg1: i32) -> (i32, i32) {
    %c0_i32 = arith.constant 0 : i32
    %c0_i32_0 = arith.constant 0 : i32
    %c0_i32_1 = arith.constant 0 : i32
    return %c0_i32, %c0_i32_0 : i32, i32
  }
  func.func @transform_2(%arg0: i32, %arg1: i32) -> (i32, i32) {
    %c0_i32 = arith.constant 0 : i32
    %c0_i32_0 = arith.constant 0 : i32
    return %c0_i32, %arg0 : i32, i32
  }
  func.func @transform_3(%arg0: i32, %arg1: i32) -> (i32, i32) {
    %c0_i32 = arith.constant 0 : i32
    %c0_i32_0 = arith.constant 0 : i32
    return %c0_i32, %arg0 : i32, i32
  }
  func.func @transform_4(%arg0: i32, %arg1: i32) -> (i32, i32) {
    %c0_i32 = arith.constant 0 : i32
    return %arg1, %arg0 : i32, i32
  }
}

</mosaic_0001>

<llo_original>
// kernel: tpu_custom_call.1
$region0: #{tpu_custom_call.1}
  #allocation0 [shape = 'u32[]', space=smem, size = 0x4, offset = 0x4, fixed_abs, tag = 'smem constant byte address 0x4 - core index']
  #allocation1 [shape = 'u32[144,128]{1,0:T(1,128)}', space=vmem, size = 0x12000, scoped, tag = 'internal scratch']
  %s0 = inlined_call_operand.vmem [shape: f32[64,7], index: 0, kind: input, shape index: {}]
  %s1 = inlined_call_operand.vmem [shape: f32[7,256], index: 1, kind: input, shape index: {}]
  %s2 = inlined_call_operand.hbm [shape: bf16[256,128], index: 2, kind: input, shape index: {}]
  %s3 = inlined_call_operand.vmem [shape: f32[1,128], index: 3, kind: input, shape index: {}]
  %s4 = inlined_call_operand.hbm [shape: bf16[64,128], index: 4, kind: output, shape index: {}]
  %s5 = sld [smem:[#allocation0]]
  $region53: #{tpu_custom_call.1} parent=0
    _
  %s7 = ssub.s32 1, %s5
  %s8 = scalar_select 0, %s7, %s5
  $region1: #{tpu_custom_call.1} parent=0
    #allocation2 [shape = 'u8[65536]{0}', space=vmem, size = 0x10000, scoped, tag = 'input window, operand 2, single buffered']
    #allocation3 [shape = 's32[2]{0}', space=sflag, size = 0x8, scoped, tag = 'scoped memory for tpu_custom_call.1']
    #allocation4 [shape = 's32[2]{0}', space=sflag, size = 0x8, scoped, tag = 'scoped memory for tpu_custom_call.1']
    #allocation5 [shape = 'u8[16384]{0}', space=vmem, size = 0x4000, scoped, tag = 'output window, operand 0']
    %9 = vsyncpa [#allocation3], 0
    %10 = vsyncpa [#allocation4], 0
    %s11 = scalar_lea.sflag [#allocation4], 1
    %12 = vsyncpa %s11, 0
    loop: start=0, step=1, limit=4
    $region2: #{tpu_custom_call.1} parent=1 // loop_pre_header
      _
    $region3: #{tpu_custom_call.1} parent=1 // loop_header
      %s14 = sphi 0, %s18
      %p15 = scmp.ge.s32.totalorder %s14, 4
      %s21 = sphi 0, %s33
      %s22 = sphi 0, %s29
      %s23 = sphi 0, %s21
      %s24 = sphi 0, %s22
      %s25 = sphi 0, %s23
      %s26 = sphi 0, %s24
      %s36 = sphi 0, %s38
      %s39 = sphi 0, %s36
      %s40 = sphi 0, %s39
      %s56 = sphi 0, %s40
      %s60 = sphi 0, %s60
      %s62 = sphi 0, %s60
      %s63 = sphi 0, %s62
      %s77 = sphi 0, %s63
      %s83 = sphi 0, %s85
      %s86 = sphi 0, %s83
      %s87 = sphi 0, %s86
      %s103 = sphi 0, %s87
      %s109 = sphi 0, %s111
      %s112 = sphi 0, %s109
      %s113 = sphi 0, %s112
      %s129 = sphi 0, %s113
      %s137 = sphi 0, %s139
      %s140 = sphi 0, %s137
      %s141 = sphi 0, %s140
      %s157 = sphi 0, %s141
    $region4: #{tpu_custom_call.1} parent=1 // loop_header_branch
      %17 = sbr.rel (%p15) target = $region8
    $region5: #{tpu_custom_call.1} parent=1 // loop_body
      %s19 = ssub.s32 %s14, 1
      %s20 = ssub.s32 %s14, 2
      %s27 = sadd.s32 1, %s22
      %p28 = scmp.ge.s32.totalorder %s27, 2
      %s29 = scalar_select %p28, 0, %s27
      %s30 = sadd.s32 1, %s21
      %s31 = scalar_select %p28, %s30, %s21
      %p32 = scmp.ge.s32.totalorder %s31, 1
      %s33 = scalar_select %p32, 0, %s31
      %s34 = ssub.s32 %s22, %s29
      %p35 = scmp.eq.s32.totalorder %s34, 0
      %s37 = sadd.s32 %s36, 1
      %s38 = scalar_select %p35, %s36, %s37
      %p41 = pneg %p35
      %p42 = scmp.eq.s32.totalorder %s14, 1
      %p43 = por %p41, %p42
      %p44 = scmp.ne.s32.totalorder %s36, %s39
      %p45 = scmp.eq.s32.totalorder %s14, 0
      %p46 = por %p44, %p45
      %p47 = scmp.ne.s32.totalorder %s36, %s39
      %p48 = scmp.eq.s32.totalorder %s19, 1
      %p49 = por %p47, %p48
      %p50 = scmp.ne.s32.totalorder %s39, %s40
      %p51 = scmp.eq.s32.totalorder %s19, 0
      %p52 = por %p50, %p51
      %p53 = scmp.ne.s32.totalorder %s39, %s40
      %p54 = scmp.eq.s32.totalorder %s20, 1
      %p55 = por %p53, %p54
      %p57 = scmp.ne.s32.totalorder %s40, %s56
      %p58 = scmp.eq.s32.totalorder %s20, 0
      %p59 = por %p57, %p58
      %s61 = sadd.s32 %s60, 1
      %p64 = scmp.eq.s32.totalorder %s14, 1
      %p65 = scmp.ne.s32.totalorder %s60, %s62
      %p66 = scmp.eq.s32.totalorder %s14, 0
      %p67 = por %p65, %p66
      %p68 = scmp.ne.s32.totalorder %s60, %s62
      %p69 = scmp.eq.s32.totalorder %s19, 1
      %p70 = por %p68, %p69
      %p71 = scmp.ne.s32.totalorder %s62, %s63
      %p72 = scmp.eq.s32.totalorder %s19, 0
      %p73 = por %p71, %p72
      %p74 = scmp.ne.s32.totalorder %s62, %s63
      %p75 = scmp.eq.s32.totalorder %s20, 1
      %p76 = por %p74, %p75
      %p78 = scmp.ne.s32.totalorder %s63, %s77
      %p79 = scmp.eq.s32.totalorder %s20, 0
      %p80 = por %p78, %p79
      %s81 = ssub.s32 %s21, %s33
      %p82 = scmp.eq.s32.totalorder %s81, 0
      %s84 = sadd.s32 %s83, 1
      %s85 = scalar_select %p82, %s83, %s84
      %p88 = pneg %p82
      %p89 = scmp.eq.s32.totalorder %s14, 1
      %p90 = por %p88, %p89
      %p91 = scmp.ne.s32.totalorder %s83, %s86
      %p92 = scmp.eq.s32.totalorder %s14, 0
      %p93 = por %p91, %p92
      %p94 = scmp.ne.s32.totalorder %s83, %s86
      %p95 = scmp.eq.s32.totalorder %s19, 1
      %p96 = por %p94, %p95
      %p97 = scmp.ne.s32.totalorder %s86, %s87
      %p98 = scmp.eq.s32.totalorder %s19, 0
      %p99 = por %p97, %p98
      %p100 = scmp.ne.s32.totalorder %s86, %s87
      %p101 = scmp.eq.s32.totalorder %s20, 1
      %p102 = por %p100, %p101
      %p104 = scmp.ne.s32.totalorder %s87, %s103
      %p105 = scmp.eq.s32.totalorder %s20, 0
      %p106 = por %p104, %p105
      %s107 = ssub.s32 %s21, %s33
      %p108 = scmp.eq.s32.totalorder %s107, 0
      %s110 = sadd.s32 %s109, 1
      %s111 = scalar_select %p108, %s109, %s110
      %p114 = pneg %p108
      %p115 = scmp.eq.s32.totalorder %s14, 1
      %p116 = por %p114, %p115
      %p117 = scmp.ne.s32.totalorder %s109, %s112
      %p118 = scmp.eq.s32.totalorder %s14, 0
      %p119 = por %p117, %p118
      %p120 = scmp.ne.s32.totalorder %s109, %s112
      %p121 = scmp.eq.s32.totalorder %s19, 1
      %p122 = por %p120, %p121
      %p123 = scmp.ne.s32.totalorder %s112, %s113
      %p124 = scmp.eq.s32.totalorder %s19, 0
      %p125 = por %p123, %p124
      %p126 = scmp.ne.s32.totalorder %s112, %s113
      %p127 = scmp.eq.s32.totalorder %s20, 1
      %p128 = por %p126, %p127
      %p130 = scmp.ne.s32.totalorder %s113, %s129
      %p131 = scmp.eq.s32.totalorder %s20, 0
      %p132 = por %p130, %p131
      %s133 = ssub.s32 %s22, %s29
      %s134 = ssub.s32 %s21, %s33
      %s135 = sor.u32 %s133, %s134
      %p136 = scmp.eq.s32.totalorder %s135, 0
      %s138 = sadd.s32 %s137, 1
      %s139 = scalar_select %p136, %s137, %s138
      %p142 = pneg %p136
      %p143 = scmp.eq.s32.totalorder %s14, 1
      %p144 = por %p142, %p143
      %p145 = scmp.ne.s32.totalorder %s137, %s140
      %p146 = scmp.eq.s32.totalorder %s14, 0
      %p147 = por %p145, %p146
      %p148 = scmp.ne.s32.totalorder %s137, %s140
      %p149 = scmp.eq.s32.totalorder %s19, 1
      %p150 = por %p148, %p149
      %p151 = scmp.ne.s32.totalorder %s140, %s141
      %p152 = scmp.eq.s32.totalorder %s19, 0
      %p153 = por %p151, %p152
      %p154 = scmp.ne.s32.totalorder %s140, %s141
      %p155 = scmp.eq.s32.totalorder %s20, 1
      %p156 = por %p154, %p155
      %p158 = scmp.ne.s32.totalorder %s141, %s157
      %p159 = scmp.eq.s32.totalorder %s20, 0
      %p160 = por %p158, %p159
      %p161 = scmp.le.s32.totalorder 1, %s14
      %p162 = scmp.lt.s32.totalorder %s14, 3
      %p163 = pnand %p161, %p162
      %p164 = pneg %p163
      // Predicated region
      $region9: #{tpu_custom_call.1} parent=5 // pred_check
        _
      $region10: #{tpu_custom_call.1} parent=5 // pred_check_branch
        %166 = sbr.rel (%p163) target = $region12
      $region11: #{tpu_custom_call.1} parent=5 // pred_region
        %s167 = ssub.s32 %s14, 1
        // Predicated region
        $region13: #{tpu_custom_call.1} parent=11 // pred_check
          %p168 = pneg %p73
        $region14: #{tpu_custom_call.1} parent=11 // pred_check_branch
          %170 = sbr.rel (%p168) target = $region16
        $region15: #{tpu_custom_call.1} parent=11 // pred_region
          _
        $region16: #{tpu_custom_call.1} parent=11 // pred_fallthru
          _
        // Predicated region
        $region17: #{tpu_custom_call.1} parent=11 // pred_check
          %p171 = pneg %p99
        $region18: #{tpu_custom_call.1} parent=11 // pred_check_branch
          %173 = sbr.rel (%p171) target = $region20
        $region19: #{tpu_custom_call.1} parent=11 // pred_region
          %s175 = ssub.s32 2048, 2048
          %176 = vsyncadd [#allocation3], %s175
          %s177 = smul.addr %s23, 64
          %s178 = scalar_lea.hbm %s2, %s177
          %s179 = sshll.u32 [#allocation2], 4
          %s180 = int_to_ptr.vmem [resolvable:$true] %s179
          %185 = dma.hbm_to_vmem [thread:$0]  %s178, 2048, %s180, [#allocation3], 64, 64, 4
        $region20: #{tpu_custom_call.1} parent=11 // pred_fallthru
          _
        // Predicated region
        $region21: #{tpu_custom_call.1} parent=11 // pred_check
          %p186 = pneg %p125
        $region22: #{tpu_custom_call.1} parent=11 // pred_check_branch
          %188 = sbr.rel (%p186) target = $region24
        $region23: #{tpu_custom_call.1} parent=11 // pred_region
          %p189 = scmp.lt.s32.totalorder %s23, 0
          %s190 = scalar_select %p189, %s23, 0
          %s191 = scalar_lea.vmem %s3, %s190
        $region24: #{tpu_custom_call.1} parent=11 // pred_fallthru
          _
      $region12: #{tpu_custom_call.1} parent=5 // pred_fallthru
        _
      %p192 = scmp.lt.s32.totalorder %s14, 2
      // Predicated region
      $region25: #{tpu_custom_call.1} parent=5 // pred_check
        %p193 = pneg %p192
      $region26: #{tpu_custom_call.1} parent=5 // pred_check_branch
        %195 = sbr.rel (%p193) target = $region28
      $region27: #{tpu_custom_call.1} parent=5 // pred_region
        // Predicated region
        $region29: #{tpu_custom_call.1} parent=27 // pred_check
          %p196 = pneg %p46
        $region30: #{tpu_custom_call.1} parent=27 // pred_check_branch
          %198 = sbr.rel (%p196) target = $region32
        $region31: #{tpu_custom_call.1} parent=27 // pred_region
          %s199 = smul.u32 4, %s22
          %p200 = scmp.lt.s32.totalorder %s199, 7
          %s201 = scalar_select %p200, %s199, 7
          %s202 = smul.addr %s201, 8
          %s203 = scalar_lea.vmem %s0, %s202
          %s204 = smul.u32 4, %s22
        $region32: #{tpu_custom_call.1} parent=27 // pred_fallthru
          _
      $region28: #{tpu_custom_call.1} parent=5 // pred_fallthru
        _
      %p205 = scmp.le.s32.totalorder 1, %s14
      %p206 = scmp.lt.s32.totalorder %s14, 3
      %p207 = pnand %p205, %p206
      %p208 = pneg %p207
      // Predicated region
      $region33: #{tpu_custom_call.1} parent=5 // pred_check
        _
      $region34: #{tpu_custom_call.1} parent=5 // pred_check_branch
        %210 = sbr.rel (%p207) target = $region36
      $region35: #{tpu_custom_call.1} parent=5 // pred_region
        %s211 = ssub.s32 %s14, 1
        // Predicated region
        $region37: #{tpu_custom_call.1} parent=35 // pred_check
          %p212 = pneg %p99
        $region38: #{tpu_custom_call.1} parent=35 // pred_check_branch
          %214 = sbr.rel (%p212) target = $region40
        $region39: #{tpu_custom_call.1} parent=35 // pred_region
          %215 = dma.done [#allocation3], 2048
        $region40: #{tpu_custom_call.1} parent=35 // pred_fallthru
          _
        %s216 = smul.u32 4, %s24
        %p217 = scmp.lt.s32.totalorder %s216, 7
        %s218 = scalar_select %p217, %s216, 7
        %s219 = smul.addr %s218, 8
        %s220 = scalar_lea.vmem %s0, %s219
        %p221 = pneg %p52
        %p222 = pneg %p49
        %p223 = pneg %p73
        %p224 = pneg %p70
        %p225 = pneg %p99
        %p226 = pneg %p96
        %p227 = scmp.lt.s32.totalorder %s23, 0
        %s228 = scalar_select %p227, %s23, 0
        %s229 = scalar_lea.vmem %s3, %s228
        %p230 = pneg %p125
        %p231 = pneg %p122
        %p232 = pneg %p153
        %p233 = pneg %p150
        %s234 = sand.u32 %s140, 1
        %s235 = scalar_lea.sflag [#allocation4], %s234
        %s236 = sand.u32 %s140, 1
        %s237 = smul.addr %s236, 16
        %s238 = scalar_lea.vmem [#allocation5], %s237
        %s239 = smul.u32 4, %s24
        %p240 = scmp.lt.s32.totalorder %s239, 7
        %s241 = scalar_select %p240, %s239, 7
        %s242 = smul.addr %s241, 8
        %s243 = scalar_lea.vmem %s0, %s242
        %s244 = smul.u32 4, %s24
        %p245 = scmp.lt.s32.totalorder %s23, 0
        %s246 = scalar_select %p245, %s23, 0
        %s247 = scalar_lea.vmem %s3, %s246
        %s248 = smul.u32 4, %s24
        %v250 = vld [vmem:[%s243] sm:$0xff]
        %v251 = vld [vmem:[%s243 + $0x8] sm:$0xff]
        %v252 = vld [vmem:[%s243 + $0x10] sm:$0xff]
        %v253 = vld [vmem:[%s243 + $0x18] sm:$0xff]
        %v254 = vld [vmem:[%s1] sm:$0x7f]
        %v255 = vld [vmem:[%s1 + $0x8] sm:$0x7f]
        %vm256 = vcmask 56320
        %v258 = vsel %vm256, %v250, 0
        %v261 = vsel %vm256, %v251, 0
        %v264 = vsel %vm256, %v252, 0
        %v267 = vsel %vm256, %v253, 0
        %vm269 = vcmask 1046528
        %v271 = vsel %vm269, %v254, 0
        %v274 = vsel %vm269, %v255, 0
        %276 = vmatprep.subr.mxu0 %v274
        %277 = vmatpush1.msra.mxu0 %v271
        %278 = vmatprep.subr.mxu0 0.0
        %279 = vmatpush1.msra.mxu0 0.0
        %280 = vmatprep.subr.mxu0 0.0
        %281 = vmatpush1.msra.mxu0 0.0
        %282 = vmatprep.subr.mxu0 0.0
        %283 = vmatpush1.msra.mxu0 0.0
        %284 = vmatprep.subr.mxu0 0.0
        %285 = vmatpush1.msra.mxu0 0.0
        %286 = vmatprep.subr.mxu0 0.0
        %287 = vmatpush1.msra.mxu0 0.0
        %288 = vmatprep.subr.mxu0 0.0
        %289 = vmatpush1.msra.mxu0 0.0
        %290 = vmatprep.subr.mxu0 0.0
        %291 = vmatpush1.msra.mxu0 0.0
        %292 = vmatprep.subr.mxu0 0.0
        %293 = vmatpush1.msra.mxu0 0.0
        %294 = vmatprep.subr.mxu0 0.0
        %295 = vmatpush1.msra.mxu0 0.0
        %296 = vmatprep.subr.mxu0 0.0
        %297 = vmatpush1.msra.mxu0 0.0
        %298 = vmatprep.subr.mxu0 0.0
        %299 = vmatpush1.msra.mxu0 0.0
        %300 = vmatprep.subr.mxu0 0.0
        %301 = vmatpush1.msra.mxu0 0.0
        %302 = vmatprep.subr.mxu0 0.0
        %303 = vmatpush1.msra.mxu0 0.0
        %304 = vmatprep.subr.mxu0 0.0
        %305 = vmatpush1.msra.mxu0 0.0
        %306 = vmatprep.subr.mxu0 0.0
        %307 = vmatpush1.msra.mxu0 0.0
        %308 = vmatprep.subr.mxu0 0.0
        %309 = vmatpush1.msra.mxu0 0.0
        %310 = vmatprep.subr.mxu0 0.0
        %311 = vmatpush1.msra.mxu0 0.0
        %312 = vmatprep.subr.mxu0 0.0
        %313 = vmatpush1.msra.mxu0 0.0
        %314 = vmatprep.subr.mxu0 0.0
        %315 = vmatpush1.msra.mxu0 0.0
        %316 = vmatprep.subr.mxu0 0.0
        %317 = vmatpush1.msra.mxu0 0.0
        %318 = vmatprep.subr.mxu0 0.0
        %319 = vmatpush1.msra.mxu0 0.0
        %320 = vmatprep.subr.mxu0 0.0
        %321 = vmatpush1.msra.mxu0 0.0
        %322 = vmatprep.subr.mxu0 0.0
        %323 = vmatpush1.msra.mxu0 0.0
        %324 = vmatprep.subr.mxu0 0.0
        %325 = vmatpush1.msra.mxu0 0.0
        %326 = vmatprep.subr.mxu0 0.0
        %327 = vmatpush1.msra.mxu0 0.0
        %328 = vmatprep.subr.mxu0 0.0
        %329 = vmatpush1.msra.mxu0 0.0
        %330 = vmatprep.subr.mxu0 0.0
        %331 = vmatpush1.msra.mxu0 0.0
        %332 = vmatprep.subr.mxu0 0.0
        %333 = vmatpush1.msra.mxu0 0.0
        %334 = vmatprep.subr.mxu0 0.0
        %335 = vmatpush1.msra.mxu0 0.0
        %336 = vmatprep.subr.mxu0 0.0
        %337 = vmatpush1.msra.mxu0 0.0
        %338 = vmatprep.subr.mxu0 0.0
        %339 = vmatpush1.msra.mxu0 0.0
        %340 = vmatprep.mubr.f32.mxu0 0.0
        %341 = vmatmul.mubr.f32.gmra.mrb[0].mxu0 %v258
        %v342 = vpop.f32.mrb[0].mxu0
        %v343 = vadd.f32 0.0, %v342
        %v344 = vpop.f32.mrb[0].mxu0
        %v345 = vadd.f32 0.0, %v344
        %346 = vmatprep.mubr.f32.mxu0 0.0
        %347 = vmatmul.mubr.f32.gmra.mrb[0].mxu0 %v261
        %v348 = vpop.f32.mrb[0].mxu0
        %v349 = vadd.f32 0.0, %v348
        %v350 = vpop.f32.mrb[0].mxu0
        %v351 = vadd.f32 0.0, %v350
        %352 = vmatprep.mubr.f32.mxu0 0.0
        %353 = vmatmul.mubr.f32.gmra.mrb[0].mxu0 %v264
        %v354 = vpop.f32.mrb[0].mxu0
        %v355 = vadd.f32 0.0, %v354
        %v356 = vpop.f32.mrb[0].mxu0
        %v357 = vadd.f32 0.0, %v356
        %358 = vmatprep.mubr.f32.mxu0 0.0
        %359 = vmatmul.mubr.f32.gmra.mrb[0].mxu0 %v267
        %v360 = vpop.f32.mrb[0].mxu0
        %v361 = vadd.f32 0.0, %v360
        %v362 = vpop.f32.mrb[0].mxu0
        %v363 = vadd.f32 0.0, %v362
        %364 = vdwg.mxu0
        %v365 = vmax.f32 %v343, 0.0
        %v366 = vmax.f32 %v345, 0.0
        %v367 = vmax.f32 %v349, 0.0
        %v368 = vmax.f32 %v351, 0.0
        %v369 = vmax.f32 %v355, 0.0
        %v370 = vmax.f32 %v357, 0.0
        %v371 = vmax.f32 %v361, 0.0
        %v372 = vmax.f32 %v363, 0.0
        %v373 = vpack.c.bf16 %v367, %v365
        %v374 = vpack.c.bf16 %v368, %v366
        %v375 = vpack.c.bf16 %v371, %v369
        %v376 = vpack.c.bf16 %v372, %v370
        %v377 = vld [vmem:[#allocation2] sm:$0xf]
        %v378 = vld [vmem:[#allocation2 + $0x4] sm:$0xf]
        %v379 = vld [vmem:[#allocation2 + $0x8] sm:$0xf]
        %v380 = vld [vmem:[#allocation2 + $0xc] sm:$0xf]
        %v381 = vld [vmem:[#allocation2 + $0x10] sm:$0xf]
        %v382 = vld [vmem:[#allocation2 + $0x14] sm:$0xf]
        %v383 = vld [vmem:[#allocation2 + $0x18] sm:$0xf]
        %v384 = vld [vmem:[#allocation2 + $0x1c] sm:$0xf]
        %v385 = vld [vmem:[#allocation2 + $0x20] sm:$0xf]
        %v386 = vld [vmem:[#allocation2 + $0x24] sm:$0xf]
        %v387 = vld [vmem:[#allocation2 + $0x28] sm:$0xf]
        %v388 = vld [vmem:[#allocation2 + $0x2c] sm:$0xf]
        %v389 = vld [vmem:[#allocation2 + $0x30] sm:$0xf]
        %v390 = vld [vmem:[#allocation2 + $0x34] sm:$0xf]
        %v391 = vld [vmem:[#allocation2 + $0x38] sm:$0xf]
        %v392 = vld [vmem:[#allocation2 + $0x3c] sm:$0xf]
        %v393 = vld [vmem:[#allocation2 + $0x40] sm:$0xf]
        %v394 = vld [vmem:[#allocation2 + $0x44] sm:$0xf]
        %v395 = vld [vmem:[#allocation2 + $0x48] sm:$0xf]
        %v396 = vld [vmem:[#allocation2 + $0x4c] sm:$0xf]
        %v397 = vld [vmem:[#allocation2 + $0x50] sm:$0xf]
        %v398 = vld [vmem:[#allocation2 + $0x54] sm:$0xf]
        %v399 = vld [vmem:[#allocation2 + $0x58] sm:$0xf]
        %v400 = vld [vmem:[#allocation2 + $0x5c] sm:$0xf]
        %v401 = vld [vmem:[#allocation2 + $0x60] sm:$0xf]
        %v402 = vld [vmem:[#allocation2 + $0x64] sm:$0xf]
        %v403 = vld [vmem:[#allocation2 + $0x68] sm:$0xf]
        %v404 = vld [vmem:[#allocation2 + $0x6c] sm:$0xf]
        %v405 = vld [vmem:[#allocation2 + $0x70] sm:$0xf]
        %v406 = vld [vmem:[#allocation2 + $0x74] sm:$0xf]
        %v407 = vld [vmem:[#allocation2 + $0x78] sm:$0xf]
        %v408 = vld [vmem:[#allocation2 + $0x7c] sm:$0xf]
        %v409 = vld [vmem:[%s247] sm:$0x1]
        %v411 = vlaneseq
        %v412 = vshrl.u32 %v411, 7
        %v413 = vsub.s32 0, %v412
        %v414 = vrot.slane %v409, %v413
        %v448 = vunpack.c.l.b16 %v377
        %v449 = vunpack.c.l.b16 %v378
        %v450 = vunpack.c.l.b16 %v379
        %v451 = vunpack.c.l.b16 %v380
        %v452 = vunpack.c.l.b16 %v381
        %v453 = vunpack.c.l.b16 %v382
        %v454 = vunpack.c.l.b16 %v383
        %v455 = vunpack.c.l.b16 %v384
        %v456 = vunpack.c.l.b16 %v385
        %v457 = vunpack.c.l.b16 %v386
        %v458 = vunpack.c.l.b16 %v387
        %v459 = vunpack.c.l.b16 %v388
        %v460 = vunpack.c.l.b16 %v389
        %v461 = vunpack.c.l.b16 %v390
        %v462 = vunpack.c.l.b16 %v391
        %v463 = vunpack.c.l.b16 %v392
        %v464 = vunpack.c.l.b16 %v393
        %v465 = vunpack.c.l.b16 %v394
        %v466 = vunpack.c.l.b16 %v395
        %v467 = vunpack.c.l.b16 %v396
        %v468 = vunpack.c.l.b16 %v397
        %v469 = vunpack.c.l.b16 %v398
        %v470 = vunpack.c.l.b16 %v399
        %v471 = vunpack.c.l.b16 %v400
        %v472 = vunpack.c.l.b16 %v401
        %v473 = vunpack.c.l.b16 %v402
        %v474 = vunpack.c.l.b16 %v403
        %v475 = vunpack.c.l.b16 %v404
        %v476 = vunpack.c.l.b16 %v405
        %v477 = vunpack.c.l.b16 %v406
        %v478 = vunpack.c.l.b16 %v407
        %v479 = vunpack.c.l.b16 %v408
        %v480 = vpack.c.b16 %v449, %v448
        %v481 = vpack.c.b16 %v451, %v450
        %v482 = vpack.c.b16 %v453, %v452
        %v483 = vpack.c.b16 %v455, %v454
        %v484 = vpack.c.b16 %v457, %v456
        %v485 = vpack.c.b16 %v459, %v458
        %v486 = vpack.c.b16 %v461, %v460
        %v487 = vpack.c.b16 %v463, %v462
        %v488 = vpack.c.b16 %v465, %v464
        %v489 = vpack.c.b16 %v467, %v466
        %v490 = vpack.c.b16 %v469, %v468
        %v491 = vpack.c.b16 %v471, %v470
        %v492 = vpack.c.b16 %v473, %v472
        %v493 = vpack.c.b16 %v475, %v474
        %v494 = vpack.c.b16 %v477, %v476
        %v495 = vpack.c.b16 %v479, %v478
        %512 = vmatprep.subr.bf16.mxu0 0
        %513 = vmatpush1.bf16.msra.mxu0 %v480
        %514 = vmatprep.subr.bf16.mxu0 0
        %515 = vmatpush1.bf16.msra.mxu0 %v481
        %516 = vmatprep.subr.bf16.mxu0 0
        %517 = vmatpush1.bf16.msra.mxu0 %v482
        %518 = vmatprep.subr.bf16.mxu0 0
        %519 = vmatpush1.bf16.msra.mxu0 %v483
        %520 = vmatprep.subr.bf16.mxu0 0
        %521 = vmatpush1.bf16.msra.mxu0 %v484
        %522 = vmatprep.subr.bf16.mxu0 0
        %523 = vmatpush1.bf16.msra.mxu0 %v485
        %524 = vmatprep.subr.bf16.mxu0 0
        %525 = vmatpush1.bf16.msra.mxu0 %v486
        %526 = vmatprep.subr.bf16.mxu0 0
        %527 = vmatpush1.bf16.msra.mxu0 %v487
        %528 = vmatprep.subr.bf16.mxu0 0
        %529 = vmatpush1.bf16.msra.mxu0 %v488
        %530 = vmatprep.subr.bf16.mxu0 0
        %531 = vmatpush1.bf16.msra.mxu0 %v489
        %532 = vmatprep.subr.bf16.mxu0 0
        %533 = vmatpush1.bf16.msra.mxu0 %v490
        %534 = vmatprep.subr.bf16.mxu0 0
        %535 = vmatpush1.bf16.msra.mxu0 %v491
        %536 = vmatprep.subr.bf16.mxu0 0
        %537 = vmatpush1.bf16.msra.mxu0 %v492
        %538 = vmatprep.subr.bf16.mxu0 0
        %539 = vmatpush1.bf16.msra.mxu0 %v493
        %540 = vmatprep.subr.bf16.mxu0 0
        %541 = vmatpush1.bf16.msra.mxu0 %v494
        %542 = vmatprep.subr.bf16.mxu0 0
        %543 = vmatpush1.bf16.msra.mxu0 %v495
        %544 = vmatprep.mubr.bf16.mxu0 %v374
        %545 = vmatmul.mubr.bf16.gmra.mrb[0].mxu0 %v373
        %v546 = vpop.f32.mrb[0].mxu0
        %v547 = vadd.f32 %v414, %v546
        %v548 = vpop.f32.mrb[0].mxu0
        %v549 = vpop.f32.mrb[0].mxu0
        %v550 = vadd.f32 %v414, %v549
        %v551 = vpop.f32.mrb[0].mxu0
        %552 = vmatprep.mubr.bf16.mxu0 %v376
        %553 = vmatmul.mubr.bf16.gmra.mrb[0].mxu0 %v375
        %v554 = vpop.f32.mrb[0].mxu0
        %v555 = vadd.f32 %v414, %v554
        %v556 = vpop.f32.mrb[0].mxu0
        %v557 = vpop.f32.mrb[0].mxu0
        %v558 = vadd.f32 %v414, %v557
        %v559 = vpop.f32.mrb[0].mxu0
        %560 = vdwg.mxu0
        %v561 = vpack.c.bf16 %v550, %v547
        %v562 = vpack.c.bf16 %v558, %v555
        %v565 = vunpack.c.l.b16 %v561
        %v566 = vunpack.c.h.b16 %v561
        %v567 = vunpack.c.l.b16 %v562
        %v568 = vunpack.c.h.b16 %v562
        %v569 = vpack.c.b16 %v565, %v565
        %v570 = vpack.c.b16 %v566, %v566
        %v571 = vpack.c.b16 %v567, %v567
        %v572 = vpack.c.b16 %v568, %v568
        %577 = vst [vmem:[%s238] sm:$0xf] %v569
        %578 = vst [vmem:[%s238 + $0x4] sm:$0xf] %v570
        %579 = vst [vmem:[%s238 + $0x8] sm:$0xf] %v571
        %580 = vst [vmem:[%s238 + $0xc] sm:$0xf] %v572
        %s581 = sand.u32 %s140, 1
        %s582 = scalar_lea.sflag [#allocation4], %s581
        %s583 = sand.u32 %s140, 1
        %s584 = smul.addr %s583, 16
        %s585 = scalar_lea.vmem [#allocation5], %s584
        // Predicated region
        $region41: #{tpu_custom_call.1} parent=35 // pred_check
          %p586 = pneg %p150
        $region42: #{tpu_custom_call.1} parent=35 // pred_check_branch
          %588 = sbr.rel (%p586) target = $region44
        $region43: #{tpu_custom_call.1} parent=35 // pred_region
          %s589 = smul.u32 4, %s24
          %s591 = ssub.s32 256, 256
          %592 = vsyncadd %s582, %s591
          %s593 = sadd.s32 %s23, %s589
          %s594 = smul.addr %s593, 64
          %s595 = scalar_lea.hbm %s4, %s594
          %s596 = sshll.u32 %s585, 4
          %s597 = int_to_ptr.vmem [resolvable:$true] %s596
          %602 = dma.vmem_to_hbm [thread:$0]  %s597, 256, %s595, %s582, 64, 64, 4
        $region44: #{tpu_custom_call.1} parent=35 // pred_fallthru
          _
      $region36: #{tpu_custom_call.1} parent=5 // pred_fallthru
        _
      %p603 = scmp.le.s32.totalorder 2, %s14
      // Predicated region
      $region45: #{tpu_custom_call.1} parent=5 // pred_check
        %p604 = pneg %p603
      $region46: #{tpu_custom_call.1} parent=5 // pred_check_branch
        %606 = sbr.rel (%p604) target = $region48
      $region47: #{tpu_custom_call.1} parent=5 // pred_region
        %s607 = ssub.s32 %s14, 2
        // Predicated region
        $region49: #{tpu_custom_call.1} parent=47 // pred_check
          %p608 = pneg %p156
        $region50: #{tpu_custom_call.1} parent=47 // pred_check_branch
          %610 = sbr.rel (%p608) target = $region52
        $region51: #{tpu_custom_call.1} parent=47 // pred_region
          %s611 = sand.u32 %s141, 1
          %s612 = scalar_lea.sflag [#allocation4], %s611
          %s613 = sand.u32 %s141, 1
          %s614 = smul.addr %s613, 16
          %s615 = scalar_lea.vmem [#allocation5], %s614
          %616 = dma.done %s612, 256
        $region52: #{tpu_custom_call.1} parent=47 // pred_fallthru
          _
      $region48: #{tpu_custom_call.1} parent=5 // pred_fallthru
        _
    $region6: #{tpu_custom_call.1} parent=1 // loop_footer
      %s18 = sadd.s32 1, %s14
    $region7: #{tpu_custom_call.1} parent=1 // loop_footer_branch
      %13 = sbr.rel target = $region3
    $region8: #{tpu_custom_call.1} parent=1 // loop_exit
      _
    %617 = vsyncpa [#allocation3], 1
    %s618 = scalar_lea.sflag [#allocation3], 1
    %619 = vsyncpa %s618, 1
    %620 = vsyncpa [#allocation4], 1
    %s621 = scalar_lea.sflag [#allocation4], 1
    %622 = vsyncpa %s621, 1

</llo_original>
